<compile_context>
chip_gen: v6e
topology: v6e:2x2x1
jax: 0.10.0
libtpu: 0.0.40
codegen_flags: <defaults>
</compile_context>

<pallas_src>
import functools

import jax
import jax.numpy as jnp
from jax.experimental import pallas as pl
from jax.experimental.pallas import tpu as pltpu


def _round_up(n, m):
    return ((n + m - 1) // m) * m


def _tom_kernel(x_ref, w1_ref, b1_ref, w2_ref, b2_ref, wh_ref, bh_ref, out_ref,
                *, reward_lane, valid_lanes):
    bf16 = jnp.bfloat16
    # fc1 + bias + ReLU   (bf16 MXU inputs, f32 accumulation, f32 epilogue)
    h1 = jnp.maximum(
        jnp.dot(x_ref[...].astype(bf16), w1_ref[...],
                preferred_element_type=jnp.float32) + b1_ref[...], 0.0)
    # fc2 + bias + ReLU   (shared layer)
    h2 = jnp.maximum(
        jnp.dot(h1.astype(bf16), w2_ref[...],
                preferred_element_type=jnp.float32) + b2_ref[...], 0.0)
    # all five heads fused into a single lane-dense matmul
    z = jnp.dot(h2.astype(bf16), wh_ref[...],
                preferred_element_type=jnp.float32) + bh_ref[...]
    lane = jax.lax.broadcasted_iota(jnp.int32, z.shape, 1)
    # sigmoid everywhere except the reward lane; zero the padded lanes
    act = jnp.where(lane == reward_lane, z, jax.nn.sigmoid(z))
    out_ref[...] = jnp.where(lane < valid_lanes, act, 0.0).astype(out_ref.dtype)


def pack_tom_params(params):
    """Fold the 7 Linear layers (weights (in,out), biases (1,out)) into three
    lane-dense bf16 weight slabs + three f32 bias rows for the fused kernel."""
    (w1, b1, w2, b2, ws, bs, wr, br, wd, bd, wm, bm, wb, bb) = params
    din, h1 = w1.shape
    h2 = w2.shape[1]

    # Head concatenation order: state, reward, done, mask, belief.
    head_dims = (ws.shape[1], wr.shape[1], wd.shape[1], wm.shape[1], wb.shape[1])
    reward_lane = head_dims[0]                 # reward column follows state
    wh = jnp.concatenate([ws, wr, wd, wm, wb], axis=1)   # (h2, total)
    bh = jnp.concatenate([bs, br, bd, bm, bb], axis=1)   # (1,  total)
    total = wh.shape[1]

    H1 = _round_up(h1, 128)
    H2 = _round_up(h2, 128)
    OUT = _round_up(total, 128)

    bf16 = jnp.bfloat16
    w1p = jnp.zeros((din, H1), bf16).at[:, :h1].set(w1.astype(bf16))
    b1p = jnp.zeros((1, H1), jnp.float32).at[:, :h1].set(b1)
    w2p = jnp.zeros((H1, H2), bf16).at[:h1, :h2].set(w2.astype(bf16))
    b2p = jnp.zeros((1, H2), jnp.float32).at[:, :h2].set(b2)
    whp = jnp.zeros((H2, OUT), bf16).at[:h2, :total].set(wh.astype(bf16))
    bhp = jnp.zeros((1, OUT), jnp.float32).at[:, :total].set(bh)

    return dict(w1=w1p, b1=b1p, w2=w2p, b2=b2p, wh=whp, bh=bhp,
                head_dims=head_dims, reward_lane=reward_lane, total=total)


def tom_transition(x, packed):
    """x: (B, state_size+action_size) f32.  packed: output of pack_tom_params.
    Returns (state, reward, done, mask, belief) in f32."""
    w1p, b1p = packed["w1"], packed["b1"]
    w2p, b2p = packed["w2"], packed["b2"]
    whp, bhp = packed["wh"], packed["bh"]
    head_dims = packed["head_dims"]
    reward_lane = packed["reward_lane"]
    total = packed["total"]

    B, din = x.shape
    assert w1p.shape[0] == din
    H1, H2, OUT = w1p.shape[1], w2p.shape[1], whp.shape[1]

    # Batch tiling: one tile when small, 512-row tiles (parallel across cores /
    # megacore) when the batch grows.
    TB = 512 if B >= 512 else _round_up(B, 8)
    Bp = _round_up(B, TB)
    if Bp != B:
        x = jnp.pad(x, ((0, Bp - B), (0, 0)))
    grid = (Bp // TB,)

    flops = 2 * Bp * (din * H1 + H1 * H2 + H2 * OUT)
    bytes_accessed = (4 * x.size + 2 * (w1p.size + w2p.size + whp.size)
                      + 4 * (b1p.size + b2p.size + bhp.size) + 4 * Bp * OUT)

    slab = pl.pallas_call(
        functools.partial(_tom_kernel, reward_lane=reward_lane, valid_lanes=total),
        out_shape=jax.ShapeDtypeStruct((Bp, OUT), jnp.float32),
        grid=grid,
        in_specs=[
            pl.BlockSpec((TB, din), lambda i: (i, 0)),   # x        : per batch tile
            pl.BlockSpec((din, H1), lambda i: (0, 0)),   # w1 bf16  : VMEM-resident
            pl.BlockSpec((1, H1), lambda i: (0, 0)),     # b1 f32
            pl.BlockSpec((H1, H2), lambda i: (0, 0)),    # w2 bf16
            pl.BlockSpec((1, H2), lambda i: (0, 0)),     # b2 f32
            pl.BlockSpec((H2, OUT), lambda i: (0, 0)),   # heads bf16 (fused)
            pl.BlockSpec((1, OUT), lambda i: (0, 0)),    # head biases f32
        ],
        out_specs=pl.BlockSpec((TB, OUT), lambda i: (i, 0)),
        compiler_params=pltpu.CompilerParams(
            dimension_semantics=("parallel",)),
        cost_estimate=pl.CostEstimate(
            flops=flops, transcendentals=Bp * total, bytes_accessed=bytes_accessed),
    )(x, w1p, b1p, w2p, b2p, whp, bhp)

    # Slice the lane-dense slab back into (state, reward, done, mask, belief).
    outs, off = [], 0
    for d in head_dims:
        outs.append(slab[:B, off:off + d])
        off += d
    return tuple(outs)


def init_params(key, state_size, action_size, mask_size, belief_size, num_players, layers):
    """Deterministic synthetic init. Weights stored as (in, out); biases as (1, out)."""
    dims = [
        (state_size + action_size, layers[0]),     # fc1
        (layers[0], layers[1]),                    # fc2
        (layers[1], state_size),                   # state
        (layers[1], 1),                            # reward
        (layers[1], 1),                            # done
        (layers[1], mask_size),                    # mask
        (layers[1], belief_size * num_players),    # belief
    ]
    params = []
    for (din, dout) in dims:
        key, kw, kb = jax.random.split(key, 3)
        scale = 1.0 / jnp.sqrt(jnp.float32(din))
        w = jax.random.uniform(kw, (din, dout), jnp.float32, -scale, scale)
        b = jax.random.uniform(kb, (1, dout), jnp.float32, -scale, scale)
        params.extend([w, b])
    return tuple(params)


def reference_forward(x, params):
    """Pure-f32 reference matching the PyTorch module's forward."""
    (w1, b1, w2, b2, ws, bs, wr, br, wd, bd, wm, bm, wb, bb) = params
    h1 = jax.nn.relu(x @ w1 + b1)
    h2 = jax.nn.relu(h1 @ w2 + b2)
    return (
        jax.nn.sigmoid(h2 @ ws + bs),
        h2 @ wr + br,
        jax.nn.sigmoid(h2 @ wd + bd),
        jax.nn.sigmoid(h2 @ wm + bm),
        jax.nn.sigmoid(h2 @ wb + bb),
    )


def packed_reference(x, packed):
    """Reference that mirrors the kernel's bf16-input / f32-accumulate math
    exactly (tight numerical check of the kernel itself)."""
    bf16 = jnp.bfloat16
    h1 = jnp.maximum(jnp.dot(x.astype(bf16), packed["w1"],
                             preferred_element_type=jnp.float32) + packed["b1"], 0.0)
    h2 = jnp.maximum(jnp.dot(h1.astype(bf16), packed["w2"],
                             preferred_element_type=jnp.float32) + packed["b2"], 0.0)
    z = jnp.dot(h2.astype(bf16), packed["wh"],
                preferred_element_type=jnp.float32) + packed["bh"]
    outs, off = [], 0
    for k, d in enumerate(packed["head_dims"]):
        zi = z[:, off:off + d]
        outs.append(zi if k == 1 else jax.nn.sigmoid(zi))   # k==1 is reward (no activation)
        off += d
    return tuple(outs)


if __name__ == "__main__":
    # Small shapes consistent with the module's forward.
    state_size, action_size = 16, 8
    mask_size, belief_size, num_players = 8, 16, 2
    layers = (64, 64)
    batch = 8

    key = jax.random.PRNGKey(0)
    kx, kp = jax.random.split(key)
    x = jax.random.normal(kx, (batch, state_size + action_size), jnp.float32)
    params = init_params(kp, state_size, action_size, mask_size,
                         belief_size, num_players, layers)

    packed = pack_tom_params(params)

    outs = tom_transition(x, packed)
    outs = jax.block_until_ready(outs)

    # Tight check: kernel vs. an XLA implementation of the exact same bf16 math.
    refs_bf16 = packed_reference(x, packed)
    for o, r in zip(outs, refs_bf16):
        assert o.shape == r.shape and o.dtype == jnp.float32
        assert jnp.max(jnp.abs(o - r)) < 1e-4

    # Semantic check: kernel vs. the pure-f32 module forward (bf16 weight tolerance).
    refs_f32 = reference_forward(x, params)
    for o, r in zip(outs, refs_f32):
        assert o.shape == r.shape
        assert jnp.max(jnp.abs(o - r)) < 5e-2

    print("KERNEL_OK")
</pallas_src>

<mosaic_0001>
module attributes {stable_mosaic.version = 11 : i64} {
  func.func @_tom_kernel(%arg0: i32, %arg1: memref<8x24xf32, #tpu.memory_space<vmem>>, %arg2: memref<24x128xbf16, #tpu.memory_space<vmem>>, %arg3: memref<1x128xf32, #tpu.memory_space<vmem>>, %arg4: memref<128x128xbf16, #tpu.memory_space<vmem>>, %arg5: memref<1x128xf32, #tpu.memory_space<vmem>>, %arg6: memref<128x128xbf16, #tpu.memory_space<vmem>>, %arg7: memref<1x128xf32, #tpu.memory_space<vmem>>, %arg8: memref<8x128xf32, #tpu.memory_space<vmem>>) attributes {dimension_semantics = [#tpu.dimension_semantics<parallel>], iteration_bounds = array<i64: 1>, scalar_prefetch = 0 : i64, scratch_operands = 0 : i64, tpu.core_type = #tpu.core_type<tc>, window_params = [{transform_indices = @transform_0, window_bounds = array<i64: 8, 24>}, {pipeline_mode = #tpu.pipeline_mode<synchronous>, transform_indices = @transform_1, window_bounds = array<i64: 24, 128>}, {pipeline_mode = #tpu.pipeline_mode<synchronous>, transform_indices = @transform_2, window_bounds = array<i64: 1, 128>}, {pipeline_mode = #tpu.pipeline_mode<synchronous>, transform_indices = @transform_3, window_bounds = array<i64: 128, 128>}, {pipeline_mode = #tpu.pipeline_mode<synchronous>, transform_indices = @transform_4, window_bounds = array<i64: 1, 128>}, {pipeline_mode = #tpu.pipeline_mode<synchronous>, transform_indices = @transform_5, window_bounds = array<i64: 128, 128>}, {pipeline_mode = #tpu.pipeline_mode<synchronous>, transform_indices = @transform_6, window_bounds = array<i64: 1, 128>}, {transform_indices = @transform_7, window_bounds = array<i64: 8, 128>}]} {
    %c0 = arith.constant 0 : index
    %c0_0 = arith.constant 0 : index
    %0 = vector.load %arg1[%c0, %c0_0] : memref<8x24xf32, #tpu.memory_space<vmem>>, vector<8x24xf32>
    %1 = arith.truncf %0 : vector<8x24xf32> to vector<8x24xbf16>
    %c0_1 = arith.constant 0 : index
    %c0_2 = arith.constant 0 : index
    %2 = vector.load %arg2[%c0_1, %c0_2] : memref<24x128xbf16, #tpu.memory_space<vmem>>, vector<24x128xbf16>
    %cst = arith.constant dense<0.000000e+00> : vector<8x128xf32>
    %3 = tpu.matmul %1, %2, %cst {dimension_numbers = #tpu.dot_dimension_numbers<[1], [0], [0], [1], [0, 0, 1, 1], [], []>} : vector<8x24xbf16>, vector<24x128xbf16>, vector<8x128xf32> -> vector<8x128xf32>
    %c0_3 = arith.constant 0 : index
    %c0_4 = arith.constant 0 : index
    %4 = vector.load %arg3[%c0_3, %c0_4] : memref<1x128xf32, #tpu.memory_space<vmem>>, vector<1x128xf32>
    %5 = vector.broadcast %4 : vector<1x128xf32> to vector<8x128xf32>
    %6 = arith.addf %3, %5 : vector<8x128xf32>
    %cst_5 = arith.constant 0.000000e+00 : f32
    %7 = vector.broadcast %cst_5 : f32 to vector<8x128xf32>
    %8 = arith.maximumf %6, %7 : vector<8x128xf32>
    %9 = arith.truncf %8 : vector<8x128xf32> to vector<8x128xbf16>
    %c0_6 = arith.constant 0 : index
    %c0_7 = arith.constant 0 : index
    %10 = vector.load %arg4[%c0_6, %c0_7] : memref<128x128xbf16, #tpu.memory_space<vmem>>, vector<128x128xbf16>
    %cst_8 = arith.constant dense<0.000000e+00> : vector<8x128xf32>
    %11 = tpu.matmul %9, %10, %cst_8 {dimension_numbers = #tpu.dot_dimension_numbers<[1], [0], [0], [1], [0, 0, 1, 1], [], []>} : vector<8x128xbf16>, vector<128x128xbf16>, vector<8x128xf32> -> vector<8x128xf32>
    %c0_9 = arith.constant 0 : index
    %c0_10 = arith.constant 0 : index
    %12 = vector.load %arg5[%c0_9, %c0_10] : memref<1x128xf32, #tpu.memory_space<vmem>>, vector<1x128xf32>
    %13 = vector.broadcast %12 : vector<1x128xf32> to vector<8x128xf32>
    %14 = arith.addf %11, %13 : vector<8x128xf32>
    %cst_11 = arith.constant 0.000000e+00 : f32
    %15 = vector.broadcast %cst_11 : f32 to vector<8x128xf32>
    %16 = arith.maximumf %14, %15 : vector<8x128xf32>
    %17 = arith.truncf %16 : vector<8x128xf32> to vector<8x128xbf16>
    %c0_12 = arith.constant 0 : index
    %c0_13 = arith.constant 0 : index
    %18 = vector.load %arg6[%c0_12, %c0_13] : memref<128x128xbf16, #tpu.memory_space<vmem>>, vector<128x128xbf16>
    %cst_14 = arith.constant dense<0.000000e+00> : vector<8x128xf32>
    %19 = tpu.matmul %17, %18, %cst_14 {dimension_numbers = #tpu.dot_dimension_numbers<[1], [0], [0], [1], [0, 0, 1, 1], [], []>} : vector<8x128xbf16>, vector<128x128xbf16>, vector<8x128xf32> -> vector<8x128xf32>
    %c0_15 = arith.constant 0 : index
    %c0_16 = arith.constant 0 : index
    %20 = vector.load %arg7[%c0_15, %c0_16] : memref<1x128xf32, #tpu.memory_space<vmem>>, vector<1x128xf32>
    %21 = vector.broadcast %20 : vector<1x128xf32> to vector<8x128xf32>
    %22 = arith.addf %19, %21 : vector<8x128xf32>
    %23 = tpu.iota {dimensions = array<i32: 1>} : vector<8x128xi32>
    %c16_i32 = arith.constant 16 : i32
    %24 = vector.broadcast %c16_i32 : i32 to vector<8x128xi32>
    %25 = arith.cmpi eq, %23, %24 : vector<8x128xi32>
    %26 = arith.negf %22 : vector<8x128xf32>
    %27 = math.exp %26 : vector<8x128xf32>
    %cst_17 = arith.constant 1.000000e+00 : f32
    %28 = vector.broadcast %cst_17 : f32 to vector<8x128xf32>
    %29 = arith.addf %28, %27 : vector<8x128xf32>
    %30 = arith.divf %28, %29 : vector<8x128xf32>
    %31 = arith.select %25, %22, %30 : vector<8x128xi1>, vector<8x128xf32>
    %c58_i32 = arith.constant 58 : i32
    %32 = vector.broadcast %c58_i32 : i32 to vector<8x128xi32>
    %33 = arith.cmpi slt, %23, %32 : vector<8x128xi32>
    %cst_18 = arith.constant 0.000000e+00 : f32
    %34 = vector.broadcast %cst_18 : f32 to vector<8x128xf32>
    %35 = arith.select %33, %31, %34 : vector<8x128xi1>, vector<8x128xf32>
    %c0_19 = arith.constant 0 : index
    %c0_20 = arith.constant 0 : index
    %36 = vector.load %arg8[%c0_19, %c0_20] : memref<8x128xf32, #tpu.memory_space<vmem>>, vector<8x128xf32>
    tpu.vector_store %arg8[%c0_19, %c0_20], %35 {strides = array<i32>} : memref<8x128xf32, #tpu.memory_space<vmem>>, vector<8x128xf32>,
    return
  }
  func.func @transform_0(%arg0: i32) -> (i32, i32) {
    %c0_i32 = arith.constant 0 : i32
    %c0_i32_0 = arith.constant 0 : i32
    return %arg0, %c0_i32 : i32, i32
  }
  func.func @transform_1(%arg0: i32) -> (i32, i32) {
    %c0_i32 = arith.constant 0 : i32
    %c0_i32_0 = arith.constant 0 : i32
    %c0_i32_1 = arith.constant 0 : i32
    return %c0_i32, %c0_i32_0 : i32, i32
  }
  func.func @transform_2(%arg0: i32) -> (i32, i32) {
    %c0_i32 = arith.constant 0 : i32
    %c0_i32_0 = arith.constant 0 : i32
    %c0_i32_1 = arith.constant 0 : i32
    return %c0_i32, %c0_i32_0 : i32, i32
  }
  func.func @transform_3(%arg0: i32) -> (i32, i32) {
    %c0_i32 = arith.constant 0 : i32
    %c0_i32_0 = arith.constant 0 : i32
    %c0_i32_1 = arith.constant 0 : i32
    return %c0_i32, %c0_i32_0 : i32, i32
  }
  func.func @transform_4(%arg0: i32) -> (i32, i32) {
    %c0_i32 = arith.constant 0 : i32
    %c0_i32_0 = arith.constant 0 : i32
    %c0_i32_1 = arith.constant 0 : i32
    return %c0_i32, %c0_i32_0 : i32, i32
  }
  func.func @transform_5(%arg0: i32) -> (i32, i32) {
    %c0_i32 = arith.constant 0 : i32
    %c0_i32_0 = arith.constant 0 : i32
    %c0_i32_1 = arith.constant 0 : i32
    return %c0_i32, %c0_i32_0 : i32, i32
  }
  func.func @transform_6(%arg0: i32) -> (i32, i32) {
    %c0_i32 = arith.constant 0 : i32
    %c0_i32_0 = arith.constant 0 : i32
    %c0_i32_1 = arith.constant 0 : i32
    return %c0_i32, %c0_i32_0 : i32, i32
  }
  func.func @transform_7(%arg0: i32) -> (i32, i32) {
    %c0_i32 = arith.constant 0 : i32
    %c0_i32_0 = arith.constant 0 : i32
    return %arg0, %c0_i32 : i32, i32
  }
}

</mosaic_0001>

<llo_original>
// kernel: tpu_custom_call.1
$region0: #{tpu_custom_call.1}
  #allocation0 [shape = 'u32[]', space=smem, size = 0x4, offset = 0x4, fixed_abs, tag = 'smem constant byte address 0x4 - core index']
  #allocation1 [shape = 'u32[144,128]{1,0:T(1,128)}', space=vmem, size = 0x12000, scoped, tag = 'internal scratch']
  %s0 = inlined_call_operand.hbm [shape: f32[8,24], index: 0, kind: input, shape index: {}]
  %s1 = inlined_call_operand.hbm [shape: bf16[24,128], index: 1, kind: input, shape index: {}]
  %s2 = inlined_call_operand.vmem [shape: f32[1,128], index: 2, kind: input, shape index: {}]
  %s3 = inlined_call_operand.hbm [shape: bf16[128,128], index: 3, kind: input, shape index: {}]
  %s4 = inlined_call_operand.vmem [shape: f32[1,128], index: 4, kind: input, shape index: {}]
  %s5 = inlined_call_operand.hbm [shape: bf16[128,128], index: 5, kind: input, shape index: {}]
  %s6 = inlined_call_operand.vmem [shape: f32[1,128], index: 6, kind: input, shape index: {}]
  %s7 = inlined_call_operand.hbm [shape: f32[8,128], index: 7, kind: output, shape index: {}]
  %s8 = sld [smem:[#allocation0]]
  $region54: #{tpu_custom_call.1} parent=0
    _
  %s10 = ssub.s32 1, %s8
  %s11 = scalar_select 0, %s10, %s8
  $region1: #{tpu_custom_call.1} parent=0
    #allocation2 [shape = 'u8[4096]{0}', space=vmem, size = 0x1000, scoped, tag = 'input window, operand 0, single buffered']
    #allocation3 [shape = 's32[1]{0}', space=sflag, size = 0x4, scoped, tag = 'scoped memory for tpu_custom_call.1']
    #allocation4 [shape = 's32[1]{0}', space=sflag, size = 0x4, scoped, tag = 'scoped memory for tpu_custom_call.1']
    #allocation5 [shape = 'u8[6144]{0}', space=vmem, size = 0x1800, scoped, tag = 'input window, operand 1, single buffered']
    #allocation6 [shape = 's32[1]{0}', space=sflag, size = 0x4, scoped, tag = 'scoped memory for tpu_custom_call.1']
    #allocation7 [shape = 'u8[32768]{0}', space=vmem, size = 0x8000, scoped, tag = 'input window, operand 3, single buffered']
    #allocation8 [shape = 'u8[32768]{0}', space=vmem, size = 0x8000, scoped, tag = 'input window, operand 5, single buffered']
    #allocation9 [shape = 's32[1]{0}', space=sflag, size = 0x4, scoped, tag = 'scoped memory for tpu_custom_call.1']
    #allocation10 [shape = 'u8[4096]{0}', space=vmem, size = 0x1000, scoped, tag = 'output window, operand 0, single buffered']
    %12 = vsyncpa [#allocation3], 0
    %13 = vsyncpa [#allocation6], 0
    %14 = vsyncpa [#allocation9], 0
    %15 = vsyncpa [#allocation4], 0
    // Predicated region
    $region2: #{tpu_custom_call.1} parent=1 // pred_check
      _
    $region3: #{tpu_custom_call.1} parent=1 // pred_check_branch
      %17 = sbr.rel (0) target = $region5
    $region4: #{tpu_custom_call.1} parent=1 // pred_region
      %s19 = ssub.s32 128, 128
      %20 = vsyncadd [#allocation3], %s19
      %s22 = sshll.u32 [#allocation2], 4
      %s23 = int_to_ptr.vmem [resolvable:$true] %s22
      %25 = dma.hbm_to_vmem [thread:$0]  %s0, 128, %s23, [#allocation3]
    $region5: #{tpu_custom_call.1} parent=1 // pred_fallthru
      _
    // Predicated region
    $region6: #{tpu_custom_call.1} parent=1 // pred_check
      _
    $region7: #{tpu_custom_call.1} parent=1 // pred_check_branch
      %27 = sbr.rel (0) target = $region9
    $region8: #{tpu_custom_call.1} parent=1 // pred_region
      %s29 = ssub.s32 192, 192
      %30 = vsyncadd [#allocation6], %s29
      %s31 = sshll.u32 [#allocation5], 4
      %s32 = int_to_ptr.vmem [resolvable:$true] %s31
      %37 = dma.hbm_to_vmem [thread:$0]  %s1, 192, %s32, [#allocation6], 64, 64, 4
    $region9: #{tpu_custom_call.1} parent=1 // pred_fallthru
      _
    // Predicated region
    $region10: #{tpu_custom_call.1} parent=1 // pred_check
      _
    $region11: #{tpu_custom_call.1} parent=1 // pred_check_branch
      %39 = sbr.rel (0) target = $region13
    $region12: #{tpu_custom_call.1} parent=1 // pred_region
      _
    $region13: #{tpu_custom_call.1} parent=1 // pred_fallthru
      _
    // Predicated region
    $region14: #{tpu_custom_call.1} parent=1 // pred_check
      _
    $region15: #{tpu_custom_call.1} parent=1 // pred_check_branch
      %41 = sbr.rel (0) target = $region17
    $region16: #{tpu_custom_call.1} parent=1 // pred_region
      %s43 = ssub.s32 1024, 1024
      %44 = vsyncadd [#allocation6], %s43
      %s45 = sshll.u32 [#allocation7], 4
      %s46 = int_to_ptr.vmem [resolvable:$true] %s45
      %51 = dma.hbm_to_vmem [thread:$0]  %s3, 1024, %s46, [#allocation6], 64, 64, 4
    $region17: #{tpu_custom_call.1} parent=1 // pred_fallthru
      _
    // Predicated region
    $region18: #{tpu_custom_call.1} parent=1 // pred_check
      _
    $region19: #{tpu_custom_call.1} parent=1 // pred_check_branch
      %53 = sbr.rel (0) target = $region21
    $region20: #{tpu_custom_call.1} parent=1 // pred_region
      _
    $region21: #{tpu_custom_call.1} parent=1 // pred_fallthru
      _
    // Predicated region
    $region22: #{tpu_custom_call.1} parent=1 // pred_check
      _
    $region23: #{tpu_custom_call.1} parent=1 // pred_check_branch
      %55 = sbr.rel (0) target = $region25
    $region24: #{tpu_custom_call.1} parent=1 // pred_region
      %s57 = ssub.s32 1024, 1024
      %58 = vsyncadd [#allocation9], %s57
      %s59 = sshll.u32 [#allocation8], 4
      %s60 = int_to_ptr.vmem [resolvable:$true] %s59
      %65 = dma.hbm_to_vmem [thread:$0]  %s5, 1024, %s60, [#allocation9], 64, 64, 4
    $region25: #{tpu_custom_call.1} parent=1 // pred_fallthru
      _
    // Predicated region
    $region26: #{tpu_custom_call.1} parent=1 // pred_check
      _
    $region27: #{tpu_custom_call.1} parent=1 // pred_check_branch
      %67 = sbr.rel (0) target = $region29
    $region28: #{tpu_custom_call.1} parent=1 // pred_region
      _
    $region29: #{tpu_custom_call.1} parent=1 // pred_fallthru
      _
    // Predicated region
    $region30: #{tpu_custom_call.1} parent=1 // pred_check
      _
    $region31: #{tpu_custom_call.1} parent=1 // pred_check_branch
      %69 = sbr.rel (0) target = $region33
    $region32: #{tpu_custom_call.1} parent=1 // pred_region
      %70 = dma.done [#allocation3], 128
    $region33: #{tpu_custom_call.1} parent=1 // pred_fallthru
      _
    // Predicated region
    $region34: #{tpu_custom_call.1} parent=1 // pred_check
      _
    $region35: #{tpu_custom_call.1} parent=1 // pred_check_branch
      %72 = sbr.rel (0) target = $region37
    $region36: #{tpu_custom_call.1} parent=1 // pred_region
      %73 = dma.done [#allocation6], 192
    $region37: #{tpu_custom_call.1} parent=1 // pred_fallthru
      _
    // Predicated region
    $region38: #{tpu_custom_call.1} parent=1 // pred_check
      _
    $region39: #{tpu_custom_call.1} parent=1 // pred_check_branch
      %75 = sbr.rel (0) target = $region41
    $region40: #{tpu_custom_call.1} parent=1 // pred_region
      %76 = dma.done [#allocation6], 1024
    $region41: #{tpu_custom_call.1} parent=1 // pred_fallthru
      _
    // Predicated region
    $region42: #{tpu_custom_call.1} parent=1 // pred_check
      _
    $region43: #{tpu_custom_call.1} parent=1 // pred_check_branch
      %78 = sbr.rel (0) target = $region45
    $region44: #{tpu_custom_call.1} parent=1 // pred_region
      %79 = dma.done [#allocation9], 1024
    $region45: #{tpu_custom_call.1} parent=1 // pred_fallthru
      _
    %v81 = vld [vmem:[#allocation2] sm:$0xff]
    %v82 = vpack.c.bf16 %v81, %v81
    %v83 = vld [vmem:[#allocation5] sm:$0xf]
    %v84 = vld [vmem:[#allocation5 + $0x4] sm:$0xf]
    %v85 = vld [vmem:[#allocation5 + $0x8] sm:$0xf]
    %v86 = vld [vmem:[%s2] sm:$0x1]
    %v88 = vlaneseq
    %v89 = vshrl.u32 %v88, 7
    %v90 = vsub.s32 0, %v89
    %v91 = vrot.slane %v86, %v90
    %v96 = vunpack.c.l.b16 %v83
    %v97 = vunpack.c.l.b16 %v84
    %v98 = vunpack.c.l.b16 %v85
    %v99 = vpack.c.b16 %v97, %v96
    %v100 = vpack.c.b16 %v98, %v98
    %vm102 = vcmask 195584
    %v104 = vsel %vm102, %v82, 0
    %vm106 = vcmask 1043456
    %v108 = vsel %vm106, %v100, 0
    %110 = vmatprep.subr.bf16.mxu0 0
    %111 = vmatpush1.bf16.msra.mxu0 0
    %112 = vmatprep.subr.bf16.mxu0 0
    %113 = vmatpush1.bf16.msra.mxu0 0
    %114 = vmatprep.subr.bf16.mxu0 0
    %115 = vmatpush1.bf16.msra.mxu0 0
    %116 = vmatprep.subr.bf16.mxu0 0
    %117 = vmatpush1.bf16.msra.mxu0 0
    %118 = vmatprep.subr.bf16.mxu0 0
    %119 = vmatpush1.bf16.msra.mxu0 0
    %120 = vmatprep.subr.bf16.mxu0 0
    %121 = vmatpush1.bf16.msra.mxu0 0
    %122 = vmatprep.subr.bf16.mxu0 0
    %123 = vmatpush1.bf16.msra.mxu0 %v108
    %124 = vmatprep.subr.bf16.mxu0 0
    %125 = vmatpush1.bf16.msra.mxu0 %v99
    %126 = vmatprep.subr.bf16.mxu0 0
    %127 = vmatpush2.bf16.msra.mxu0 0
    %128 = vmatprep.subr.bf16.mxu0 0
    %129 = vmatpush2.bf16.msra.mxu0 0
    %130 = vmatprep.subr.bf16.mxu0 0
    %131 = vmatpush2.bf16.msra.mxu0 0
    %132 = vmatprep.subr.bf16.mxu0 0
    %133 = vmatpush2.bf16.msra.mxu0 0
    %134 = vmatprep.subr.bf16.mxu0 0
    %135 = vmatpush2.bf16.msra.mxu0 0
    %136 = vmatprep.subr.bf16.mxu0 0
    %137 = vmatpush2.bf16.msra.mxu0 0
    %138 = vmatprep.subr.bf16.mxu0 0
    %139 = vmatpush2.bf16.msra.mxu0 0
    %140 = vmatprep.subr.bf16.mxu0 0
    %141 = vmatpush2.bf16.msra.mxu0 0
    %142 = vmatprep.mubr.bf16.mxu0 0
    %143 = vmatmul.mubr.bf16.gmra.mxu0 %v104
    %v144 = vpop.f32.mrf.mxu0
    %v145 = vadd.f32 %v91, %v144
    %v146 = vpop.f32.mrf.mxu0
    %v147 = vpop.f32.mrf.mxu0
    %v148 = vpop.f32.mrf.mxu0
    %149 = vdwg.mxu0
    %v150 = vmax.f32 %v145, 0.0
    %v151 = vpack.c.bf16 %v150, %v150
    %v152 = vld [vmem:[#allocation7] sm:$0xf]
    %v153 = vld [vmem:[#allocation7 + $0x4] sm:$0xf]
    %v154 = vld [vmem:[#allocation7 + $0x8] sm:$0xf]
    %v155 = vld [vmem:[#allocation7 + $0xc] sm:$0xf]
    %v156 = vld [vmem:[#allocation7 + $0x10] sm:$0xf]
    %v157 = vld [vmem:[#allocation7 + $0x14] sm:$0xf]
    %v158 = vld [vmem:[#allocation7 + $0x18] sm:$0xf]
    %v159 = vld [vmem:[#allocation7 + $0x1c] sm:$0xf]
    %v160 = vld [vmem:[#allocation7 + $0x20] sm:$0xf]
    %v161 = vld [vmem:[#allocation7 + $0x24] sm:$0xf]
    %v162 = vld [vmem:[#allocation7 + $0x28] sm:$0xf]
    %v163 = vld [vmem:[#allocation7 + $0x2c] sm:$0xf]
    %v164 = vld [vmem:[#allocation7 + $0x30] sm:$0xf]
    %v165 = vld [vmem:[#allocation7 + $0x34] sm:$0xf]
    %v166 = vld [vmem:[#allocation7 + $0x38] sm:$0xf]
    %v167 = vld [vmem:[#allocation7 + $0x3c] sm:$0xf]
    %v168 = vld [vmem:[%s4] sm:$0x1]
    %v170 = vlaneseq
    %v171 = vshrl.u32 %v170, 7
    %v172 = vsub.s32 0, %v171
    %v173 = vrot.slane %v168, %v172
    %v191 = vunpack.c.l.b16 %v152
    %v192 = vunpack.c.l.b16 %v153
    %v193 = vunpack.c.l.b16 %v154
    %v194 = vunpack.c.l.b16 %v155
    %v195 = vunpack.c.l.b16 %v156
    %v196 = vunpack.c.l.b16 %v157
    %v197 = vunpack.c.l.b16 %v158
    %v198 = vunpack.c.l.b16 %v159
    %v199 = vunpack.c.l.b16 %v160
    %v200 = vunpack.c.l.b16 %v161
    %v201 = vunpack.c.l.b16 %v162
    %v202 = vunpack.c.l.b16 %v163
    %v203 = vunpack.c.l.b16 %v164
    %v204 = vunpack.c.l.b16 %v165
    %v205 = vunpack.c.l.b16 %v166
    %v206 = vunpack.c.l.b16 %v167
    %v207 = vpack.c.b16 %v192, %v191
    %v208 = vpack.c.b16 %v194, %v193
    %v209 = vpack.c.b16 %v196, %v195
    %v210 = vpack.c.b16 %v198, %v197
    %v211 = vpack.c.b16 %v200, %v199
    %v212 = vpack.c.b16 %v202, %v201
    %v213 = vpack.c.b16 %v204, %v203
    %v214 = vpack.c.b16 %v206, %v205
    %223 = vmatprep.subr.bf16.mxu0 0
    %224 = vmatpush1.bf16.msra.mxu0 %v214
    %225 = vmatprep.subr.bf16.mxu0 0
    %226 = vmatpush1.bf16.msra.mxu0 %v213
    %227 = vmatprep.subr.bf16.mxu0 0
    %228 = vmatpush1.bf16.msra.mxu0 %v212
    %229 = vmatprep.subr.bf16.mxu0 0
    %230 = vmatpush1.bf16.msra.mxu0 %v211
    %231 = vmatprep.subr.bf16.mxu0 0
    %232 = vmatpush1.bf16.msra.mxu0 %v210
    %233 = vmatprep.subr.bf16.mxu0 0
    %234 = vmatpush1.bf16.msra.mxu0 %v209
    %235 = vmatprep.subr.bf16.mxu0 0
    %236 = vmatpush1.bf16.msra.mxu0 %v208
    %237 = vmatprep.subr.bf16.mxu0 0
    %238 = vmatpush1.bf16.msra.mxu0 %v207
    %239 = vmatprep.subr.bf16.mxu0 0
    %240 = vmatpush2.bf16.msra.mxu0 0
    %241 = vmatprep.subr.bf16.mxu0 0
    %242 = vmatpush2.bf16.msra.mxu0 0
    %243 = vmatprep.subr.bf16.mxu0 0
    %244 = vmatpush2.bf16.msra.mxu0 0
    %245 = vmatprep.subr.bf16.mxu0 0
    %246 = vmatpush2.bf16.msra.mxu0 0
    %247 = vmatprep.subr.bf16.mxu0 0
    %248 = vmatpush2.bf16.msra.mxu0 0
    %249 = vmatprep.subr.bf16.mxu0 0
    %250 = vmatpush2.bf16.msra.mxu0 0
    %251 = vmatprep.subr.bf16.mxu0 0
    %252 = vmatpush2.bf16.msra.mxu0 0
    %253 = vmatprep.subr.bf16.mxu0 0
    %254 = vmatpush2.bf16.msra.mxu0 0
    %255 = vmatprep.mubr.bf16.mxu0 0
    %256 = vmatmul.mubr.bf16.gmra.mxu0 %v151
    %v257 = vpop.f32.mrf.mxu0
    %v258 = vadd.f32 %v173, %v257
    %v259 = vpop.f32.mrf.mxu0
    %v260 = vpop.f32.mrf.mxu0
    %v261 = vpop.f32.mrf.mxu0
    %262 = vdwg.mxu0
    %v263 = vmax.f32 %v258, 0.0
    %v264 = vpack.c.bf16 %v263, %v263
    %v265 = vld [vmem:[#allocation8] sm:$0xf]
    %v266 = vld [vmem:[#allocation8 + $0x4] sm:$0xf]
    %v267 = vld [vmem:[#allocation8 + $0x8] sm:$0xf]
    %v268 = vld [vmem:[#allocation8 + $0xc] sm:$0xf]
    %v269 = vld [vmem:[#allocation8 + $0x10] sm:$0xf]
    %v270 = vld [vmem:[#allocation8 + $0x14] sm:$0xf]
    %v271 = vld [vmem:[#allocation8 + $0x18] sm:$0xf]
    %v272 = vld [vmem:[#allocation8 + $0x1c] sm:$0xf]
    %v273 = vld [vmem:[#allocation8 + $0x20] sm:$0xf]
    %v274 = vld [vmem:[#allocation8 + $0x24] sm:$0xf]
    %v275 = vld [vmem:[#allocation8 + $0x28] sm:$0xf]
    %v276 = vld [vmem:[#allocation8 + $0x2c] sm:$0xf]
    %v277 = vld [vmem:[#allocation8 + $0x30] sm:$0xf]
    %v278 = vld [vmem:[#allocation8 + $0x34] sm:$0xf]
    %v279 = vld [vmem:[#allocation8 + $0x38] sm:$0xf]
    %v280 = vld [vmem:[#allocation8 + $0x3c] sm:$0xf]
    %v281 = vld [vmem:[%s6] sm:$0x1]
    %v283 = vlaneseq
    %v284 = vshrl.u32 %v283, 7
    %v285 = vsub.s32 0, %v284
    %v286 = vrot.slane %v281, %v285
    %v304 = vunpack.c.l.b16 %v265
    %v305 = vunpack.c.l.b16 %v266
    %v306 = vunpack.c.l.b16 %v267
    %v307 = vunpack.c.l.b16 %v268
    %v308 = vunpack.c.l.b16 %v269
    %v309 = vunpack.c.l.b16 %v270
    %v310 = vunpack.c.l.b16 %v271
    %v311 = vunpack.c.l.b16 %v272
    %v312 = vunpack.c.l.b16 %v273
    %v313 = vunpack.c.l.b16 %v274
    %v314 = vunpack.c.l.b16 %v275
    %v315 = vunpack.c.l.b16 %v276
    %v316 = vunpack.c.l.b16 %v277
    %v317 = vunpack.c.l.b16 %v278
    %v318 = vunpack.c.l.b16 %v279
    %v319 = vunpack.c.l.b16 %v280
    %v320 = vpack.c.b16 %v305, %v304
    %v321 = vpack.c.b16 %v307, %v306
    %v322 = vpack.c.b16 %v309, %v308
    %v323 = vpack.c.b16 %v311, %v310
    %v324 = vpack.c.b16 %v313, %v312
    %v325 = vpack.c.b16 %v315, %v314
    %v326 = vpack.c.b16 %v317, %v316
    %v327 = vpack.c.b16 %v319, %v318
    %336 = vmatprep.subr.bf16.mxu0 0
    %337 = vmatpush1.bf16.msra.mxu0 %v327
    %338 = vmatprep.subr.bf16.mxu0 0
    %339 = vmatpush1.bf16.msra.mxu0 %v326
    %340 = vmatprep.subr.bf16.mxu0 0
    %341 = vmatpush1.bf16.msra.mxu0 %v325
    %342 = vmatprep.subr.bf16.mxu0 0
    %343 = vmatpush1.bf16.msra.mxu0 %v324
    %344 = vmatprep.subr.bf16.mxu0 0
    %345 = vmatpush1.bf16.msra.mxu0 %v323
    %346 = vmatprep.subr.bf16.mxu0 0
    %347 = vmatpush1.bf16.msra.mxu0 %v322
    %348 = vmatprep.subr.bf16.mxu0 0
    %349 = vmatpush1.bf16.msra.mxu0 %v321
    %350 = vmatprep.subr.bf16.mxu0 0
    %351 = vmatpush1.bf16.msra.mxu0 %v320
    %352 = vmatprep.subr.bf16.mxu0 0
    %353 = vmatpush2.bf16.msra.mxu0 0
    %354 = vmatprep.subr.bf16.mxu0 0
    %355 = vmatpush2.bf16.msra.mxu0 0
    %356 = vmatprep.subr.bf16.mxu0 0
    %357 = vmatpush2.bf16.msra.mxu0 0
    %358 = vmatprep.subr.bf16.mxu0 0
    %359 = vmatpush2.bf16.msra.mxu0 0
    %360 = vmatprep.subr.bf16.mxu0 0
    %361 = vmatpush2.bf16.msra.mxu0 0
    %362 = vmatprep.subr.bf16.mxu0 0
    %363 = vmatpush2.bf16.msra.mxu0 0
    %364 = vmatprep.subr.bf16.mxu0 0
    %365 = vmatpush2.bf16.msra.mxu0 0
    %366 = vmatprep.subr.bf16.mxu0 0
    %367 = vmatpush2.bf16.msra.mxu0 0
    %368 = vmatprep.mubr.bf16.mxu0 0
    %369 = vmatmul.mubr.bf16.gmra.mxu0 %v264
    %v370 = vpop.f32.mrf.mxu0
    %v371 = vadd.f32 %v286, %v370
    %v372 = vpop.f32.mrf.mxu0
    %v373 = vpop.f32.mrf.mxu0
    %v374 = vpop.f32.mrf.mxu0
    %375 = vdwg.mxu0
    %v376 = vlaneseq
    %v377 = vand.u32 %v376, 127
    %vm378 = vcmp.eq.s32.totalorder %v377, 16
    %v379 = vxor.u32 %v371, 2147483648
    %v380 = vmul.f32 %v379, 1.442695
    %v381 = vpow.pop %v380
    %v382 = vadd.f32 %v381, 1.0
    %v383 = vrcp.pop %v382
    %v384 = vmul.f32 1.0, %v383
    %v385 = vsel %vm378, %v371, %v384
    %vm386 = vcmp.lt.s32.totalorder %v377, 58
    %v387 = vsel %vm386, %v385, 0.0
    %388 = vst [vmem:[#allocation10] sm:$0xff] %v387
    // Predicated region
    $region46: #{tpu_custom_call.1} parent=1 // pred_check
      _
    $region47: #{tpu_custom_call.1} parent=1 // pred_check_branch
      %390 = sbr.rel (0) target = $region49
    $region48: #{tpu_custom_call.1} parent=1 // pred_region
      %s392 = ssub.s32 128, 128
      %393 = vsyncadd [#allocation4], %s392
      %s395 = sshll.u32 [#allocation10], 4
      %s396 = int_to_ptr.vmem [resolvable:$true] %s395
      %398 = dma.vmem_to_hbm [thread:$0]  %s396, 128, %s7, [#allocation4]
    $region49: #{tpu_custom_call.1} parent=1 // pred_fallthru
      _
    // Predicated region
    $region50: #{tpu_custom_call.1} parent=1 // pred_check
      _
    $region51: #{tpu_custom_call.1} parent=1 // pred_check_branch
      %400 = sbr.rel (0) target = $region53
    $region52: #{tpu_custom_call.1} parent=1 // pred_region
      %401 = dma.done [#allocation4], 128
    $region53: #{tpu_custom_call.1} parent=1 // pred_fallthru
      _
    %402 = vsyncpa [#allocation3], 1
    %403 = vsyncpa [#allocation6], 1
    %404 = vsyncpa [#allocation9], 1
    %405 = vsyncpa [#allocation4], 1

</llo_original>
